<compile_context>
chip_gen: v7x
topology: tpu7x:2x2x1
jax: 0.10.0
libtpu: 0.0.40
codegen_flags: <defaults>
</compile_context>

<pallas_src>
import functools

import jax
import jax.numpy as jnp
from jax.experimental import pallas as pl
from jax.experimental.pallas import tpu as pltpu

LANE = 128  # lane width / MXU-friendly padding target for the hidden dim


def _round_up(n, m):
    return ((n + m - 1) // m) * m


def _pad_to(a, shape):
    pads = [(0, s - d) for d, s in zip(a.shape, shape)]
    return jnp.pad(a, pads)


def prepare_params(w1, b1, w2, b2):
    """Pad/cast parameters ONCE at load time (hoisted out of the forward).

    w1: [n_in, n_hidden], b1: [n_hidden], w2: [n_hidden, n_out], b2: [n_out]
    (weights stored pre-transposed as [in_features, out_features], equivalent
    to PyTorch's x @ W.T + b).  Only the hidden dim is padded (to 128) so both
    matmuls see a lane-dense 128-wide N/K; padded rows/cols/bias lanes are zero
    and relu(0 + 0) = 0 keeps the second matmul exact.
    """
    n_in, n_hidden = w1.shape
    n_out = w2.shape[1]
    hid_p = _round_up(n_hidden, LANE)
    w1_p = _pad_to(w1, (n_in, hid_p)).astype(jnp.bfloat16)
    b1_p = _pad_to(b1.reshape(1, -1), (1, hid_p)).astype(jnp.float32)
    w2_p = _pad_to(w2, (hid_p, n_out)).astype(jnp.bfloat16)
    b2_p = b2.reshape(1, -1).astype(jnp.float32)
    return w1_p, b1_p, w2_p, b2_p


def mlp_kernel(x_ref, w1_ref, b1_ref, w2_ref, b2_ref, o_ref):
    # Hidden linear: cast x to bf16 in VMEM (no extra HBM pass), fp32 acc.
    x_bf = x_ref[...].astype(jnp.bfloat16)
    h = jnp.dot(x_bf, w1_ref[...], preferred_element_type=jnp.float32)
    h = jnp.maximum(h + b1_ref[...], 0.0)  # fp32 elementwise (v5e-safe)
    # Output linear: bf16 operands on the MXU, fp32 accumulation.
    y = jnp.dot(h.astype(jnp.bfloat16), w2_ref[...],
                preferred_element_type=jnp.float32)
    o_ref[...] = (y + b2_ref[...]).astype(o_ref.dtype)


@functools.partial(jax.jit, static_argnames=("tb",))
def classification_forward(x, w1_p, b1_p, w2_p, b2_p, tb=None):
    """x: [B, n_in] fp32; prepared params from `prepare_params` -> [B, n_out] fp32."""
    B, n_in = x.shape
    hid_p = w1_p.shape[1]
    n_out = w2_p.shape[1]

    # Batch tile heuristic:
    #  * large B: 512-row tiles (near-roofline mem-bound tile size),
    #  * mid B:   split into >=2 grid steps so v7x's two TCs both get work,
    #  * tiny B:  one tile rounded up to the 8-row sublane granule.
    if tb is None:
        if B >= 1024:
            tb = 512
        elif B >= 32:
            tb = _round_up(-(-B // 2), 8)
        else:
            tb = _round_up(max(B, 1), 8)
    b_p = _round_up(B, tb)
    if b_p != B:
        # Batch-only zero padding (cheap); padded rows are sliced off below.
        x = jnp.pad(x, ((0, b_p - B), (0, 0)))
    grid = (b_p // tb,)

    flops = 2 * b_p * (n_in * hid_p + hid_p * n_out)
    bytes_accessed = (b_p * n_in * 4            # x read (fp32, unpadded lanes)
                      + w1_p.size * 2 + w2_p.size * 2
                      + b1_p.size * 4 + b2_p.size * 4
                      + b_p * n_out * 4)        # output write (fp32, unpadded)

    out = pl.pallas_call(
        mlp_kernel,
        out_shape=jax.ShapeDtypeStruct((b_p, n_out), jnp.float32),
        grid=grid,
        in_specs=[
            # x: tiled along the batch grid axis; lane dim = full n_in (legal,
            # Mosaic pads K internally for the MXU).
            pl.BlockSpec((tb, n_in), lambda i: (i, 0)),
            # weights / biases: constant block index -> fetched once,
            # VMEM-resident across all batch tiles.
            pl.BlockSpec((n_in, hid_p), lambda i: (0, 0)),
            pl.BlockSpec((1, hid_p), lambda i: (0, 0)),
            pl.BlockSpec((hid_p, n_out), lambda i: (0, 0)),
            pl.BlockSpec((1, n_out), lambda i: (0, 0)),
        ],
        # Unpadded output lanes: 16x fewer output bytes than a 128-padded fp32
        # slab, and no wrapper slice pass over padded lanes.
        out_specs=pl.BlockSpec((tb, n_out), lambda i: (i, 0)),
        compiler_params=pltpu.CompilerParams(
            dimension_semantics=("parallel",)),
        cost_estimate=pl.CostEstimate(
            flops=flops, transcendentals=0, bytes_accessed=bytes_accessed),
    )(x, w1_p, b1_p, w2_p, b2_p)

    return out if b_p == B else out[:B]


if __name__ == "__main__":
    # Small shapes consistent with the module's forward:
    #   n_input=32, n_hidden=64, n_output=8, batch=8
    B, n_input, n_hidden, n_output = 8, 32, 64, 8

    key = jax.random.PRNGKey(0)
    kx, kw1, kb1, kw2, kb2 = jax.random.split(key, 5)

    x = jax.random.normal(kx, (B, n_input), dtype=jnp.float32)
    # Deterministic param init (PyTorch-like uniform scale), stored transposed
    # as [in, out] for the kernel's row-major matmuls.
    w1 = jax.random.uniform(kw1, (n_input, n_hidden), jnp.float32,
                            minval=-1.0, maxval=1.0) / jnp.sqrt(n_input)
    b1 = jax.random.uniform(kb1, (n_hidden,), jnp.float32,
                            minval=-1.0, maxval=1.0) / jnp.sqrt(n_input)
    w2 = jax.random.uniform(kw2, (n_hidden, n_output), jnp.float32,
                            minval=-1.0, maxval=1.0) / jnp.sqrt(n_hidden)
    b2 = jax.random.uniform(kb2, (n_output,), jnp.float32,
                            minval=-1.0, maxval=1.0) / jnp.sqrt(n_hidden)

    # Parameter padding/casting happens once, outside the forward.
    params = prepare_params(w1, b1, w2, b2)

    y = classification_forward(x, *params)
    jax.block_until_ready(y)
    assert y.shape == (B, n_output)

    # Reference 1: same bf16 operand quantization as the kernel (tight tol).
    def q(a):
        return a.astype(jnp.bfloat16).astype(jnp.float32)

    h_ref = jnp.maximum(q(x) @ q(w1) + b1[None, :], 0.0)
    ref_q = q(h_ref) @ q(w2) + b2[None, :]
    assert jnp.allclose(y, ref_q, atol=1e-3, rtol=1e-3)

    # Reference 2: full fp32 math (loose tolerance for bf16 operand rounding).
    # TODO(synk): if exact fp32 parity is required, run the dots in fp32 (the
    # kernel is not MXU-bound so the throughput cost would be negligible).
    ref_f32 = jnp.maximum(x @ w1 + b1[None, :], 0.0) @ w2 + b2[None, :]
    assert jnp.allclose(y, ref_f32, atol=3e-2, rtol=3e-2)

    print("KERNEL_OK")
</pallas_src>

<mosaic_0001>
module attributes {stable_mosaic.version = 11 : i64} {
  func.func @mlp_kernel(%arg0: i32, %arg1: memref<8x32xf32, #tpu.memory_space<vmem>>, %arg2: memref<32x128xbf16, #tpu.memory_space<vmem>>, %arg3: memref<1x128xf32, #tpu.memory_space<vmem>>, %arg4: memref<128x8xbf16, #tpu.memory_space<vmem>>, %arg5: memref<1x8xf32, #tpu.memory_space<vmem>>, %arg6: memref<8x8xf32, #tpu.memory_space<vmem>>) attributes {dimension_semantics = [#tpu.dimension_semantics<parallel>], iteration_bounds = array<i64: 1>, scalar_prefetch = 0 : i64, scratch_operands = 0 : i64, tpu.core_type = #tpu.core_type<tc>, window_params = [{transform_indices = @transform_0, window_bounds = array<i64: 8, 32>}, {pipeline_mode = #tpu.pipeline_mode<synchronous>, transform_indices = @transform_1, window_bounds = array<i64: 32, 128>}, {pipeline_mode = #tpu.pipeline_mode<synchronous>, transform_indices = @transform_2, window_bounds = array<i64: 1, 128>}, {pipeline_mode = #tpu.pipeline_mode<synchronous>, transform_indices = @transform_3, window_bounds = array<i64: 128, 8>}, {pipeline_mode = #tpu.pipeline_mode<synchronous>, transform_indices = @transform_4, window_bounds = array<i64: 1, 8>}, {transform_indices = @transform_5, window_bounds = array<i64: 8, 8>}]} {
    %c0 = arith.constant 0 : index
    %c0_0 = arith.constant 0 : index
    %0 = vector.load %arg1[%c0, %c0_0] : memref<8x32xf32, #tpu.memory_space<vmem>>, vector<8x32xf32>
    %1 = arith.truncf %0 : vector<8x32xf32> to vector<8x32xbf16>
    %c0_1 = arith.constant 0 : index
    %c0_2 = arith.constant 0 : index
    %2 = vector.load %arg2[%c0_1, %c0_2] : memref<32x128xbf16, #tpu.memory_space<vmem>>, vector<32x128xbf16>
    %cst = arith.constant dense<0.000000e+00> : vector<8x128xf32>
    %3 = tpu.matmul %1, %2, %cst {dimension_numbers = #tpu.dot_dimension_numbers<[1], [0], [0], [1], [0, 0, 1, 1], [], []>} : vector<8x32xbf16>, vector<32x128xbf16>, vector<8x128xf32> -> vector<8x128xf32>
    %c0_3 = arith.constant 0 : index
    %c0_4 = arith.constant 0 : index
    %4 = vector.load %arg3[%c0_3, %c0_4] : memref<1x128xf32, #tpu.memory_space<vmem>>, vector<1x128xf32>
    %5 = vector.broadcast %4 : vector<1x128xf32> to vector<8x128xf32>
    %6 = arith.addf %3, %5 : vector<8x128xf32>
    %cst_5 = arith.constant 0.000000e+00 : f32
    %7 = vector.broadcast %cst_5 : f32 to vector<8x128xf32>
    %8 = arith.maximumf %6, %7 : vector<8x128xf32>
    %9 = arith.truncf %8 : vector<8x128xf32> to vector<8x128xbf16>
    %c0_6 = arith.constant 0 : index
    %c0_7 = arith.constant 0 : index
    %10 = vector.load %arg4[%c0_6, %c0_7] : memref<128x8xbf16, #tpu.memory_space<vmem>>, vector<128x8xbf16>
    %cst_8 = arith.constant dense<0.000000e+00> : vector<8x8xf32>
    %11 = tpu.matmul %9, %10, %cst_8 {dimension_numbers = #tpu.dot_dimension_numbers<[1], [0], [0], [1], [0, 0, 1, 1], [], []>} : vector<8x128xbf16>, vector<128x8xbf16>, vector<8x8xf32> -> vector<8x8xf32>
    %c0_9 = arith.constant 0 : index
    %c0_10 = arith.constant 0 : index
    %12 = vector.load %arg5[%c0_9, %c0_10] : memref<1x8xf32, #tpu.memory_space<vmem>>, vector<1x8xf32>
    %13 = vector.broadcast %12 : vector<1x8xf32> to vector<8x8xf32>
    %14 = arith.addf %11, %13 : vector<8x8xf32>
    %c0_11 = arith.constant 0 : index
    %c0_12 = arith.constant 0 : index
    %15 = vector.load %arg6[%c0_11, %c0_12] : memref<8x8xf32, #tpu.memory_space<vmem>>, vector<8x8xf32>
    tpu.vector_store %arg6[%c0_11, %c0_12], %14 {strides = array<i32>} : memref<8x8xf32, #tpu.memory_space<vmem>>, vector<8x8xf32>,
    return
  }
  func.func @transform_0(%arg0: i32) -> (i32, i32) {
    %c0_i32 = arith.constant 0 : i32
    %c0_i32_0 = arith.constant 0 : i32
    return %arg0, %c0_i32 : i32, i32
  }
  func.func @transform_1(%arg0: i32) -> (i32, i32) {
    %c0_i32 = arith.constant 0 : i32
    %c0_i32_0 = arith.constant 0 : i32
    %c0_i32_1 = arith.constant 0 : i32
    return %c0_i32, %c0_i32_0 : i32, i32
  }
  func.func @transform_2(%arg0: i32) -> (i32, i32) {
    %c0_i32 = arith.constant 0 : i32
    %c0_i32_0 = arith.constant 0 : i32
    %c0_i32_1 = arith.constant 0 : i32
    return %c0_i32, %c0_i32_0 : i32, i32
  }
  func.func @transform_3(%arg0: i32) -> (i32, i32) {
    %c0_i32 = arith.constant 0 : i32
    %c0_i32_0 = arith.constant 0 : i32
    %c0_i32_1 = arith.constant 0 : i32
    return %c0_i32, %c0_i32_0 : i32, i32
  }
  func.func @transform_4(%arg0: i32) -> (i32, i32) {
    %c0_i32 = arith.constant 0 : i32
    %c0_i32_0 = arith.constant 0 : i32
    %c0_i32_1 = arith.constant 0 : i32
    return %c0_i32, %c0_i32_0 : i32, i32
  }
  func.func @transform_5(%arg0: i32) -> (i32, i32) {
    %c0_i32 = arith.constant 0 : i32
    %c0_i32_0 = arith.constant 0 : i32
    return %arg0, %c0_i32 : i32, i32
  }
}

</mosaic_0001>

<llo_original>
// kernel: classification_forward.1
$region0: #{classification_forward.1}
  #allocation0 [shape = 'u32[]', space=smem, size = 0x4, offset = 0x4, fixed_abs, tag = 'smem constant byte address 0x4 - core index']
  #allocation1 [shape = 'u32[144,128]{1,0:T(1,128)}', space=vmem, size = 0x12000, scoped, tag = 'internal scratch']
  %s0 = inlined_call_operand.vmem [shape: f32[8,32], index: 0, kind: input, shape index: {}]
  %s1 = inlined_call_operand.vmem [shape: bf16[32,128], index: 1, kind: input, shape index: {}]
  %s2 = inlined_call_operand.vmem [shape: f32[1,128], index: 2, kind: input, shape index: {}]
  %s3 = inlined_call_operand.vmem [shape: bf16[128,8], index: 3, kind: input, shape index: {}]
  %s4 = inlined_call_operand.vmem [shape: f32[1,8], index: 4, kind: input, shape index: {}]
  %s5 = inlined_call_operand.hbm [shape: f32[8,8], index: 5, kind: output, shape index: {}]
  %s6 = sld [smem:[#allocation0]]
  $region30: #{classification_forward.1} parent=0
    _
  %s8 = ssub.s32 1, %s6
  %s9 = scalar_select 0, %s8, %s6
  $region1: #{classification_forward.1} parent=0
    #allocation2 [shape = 'u8[4096]{0}', space=vmem, size = 0x1000, scoped, tag = 'output window, operand 0, single buffered']
    #allocation3 [shape = 's32[1]{0}', space=sflag, size = 0x4, scoped, tag = 'scoped memory for classification_forward.1']
    %10 = vsyncpa [#allocation3], 0
    // Predicated region
    $region2: #{classification_forward.1} parent=1 // pred_check
      _
    $region3: #{classification_forward.1} parent=1 // pred_check_branch
      %12 = sbr.rel (0) target = $region5
    $region4: #{classification_forward.1} parent=1 // pred_region
      _
    $region5: #{classification_forward.1} parent=1 // pred_fallthru
      _
    // Predicated region
    $region6: #{classification_forward.1} parent=1 // pred_check
      _
    $region7: #{classification_forward.1} parent=1 // pred_check_branch
      %14 = sbr.rel (0) target = $region9
    $region8: #{classification_forward.1} parent=1 // pred_region
      _
    $region9: #{classification_forward.1} parent=1 // pred_fallthru
      _
    // Predicated region
    $region10: #{classification_forward.1} parent=1 // pred_check
      _
    $region11: #{classification_forward.1} parent=1 // pred_check_branch
      %16 = sbr.rel (0) target = $region13
    $region12: #{classification_forward.1} parent=1 // pred_region
      _
    $region13: #{classification_forward.1} parent=1 // pred_fallthru
      _
    // Predicated region
    $region14: #{classification_forward.1} parent=1 // pred_check
      _
    $region15: #{classification_forward.1} parent=1 // pred_check_branch
      %18 = sbr.rel (0) target = $region17
    $region16: #{classification_forward.1} parent=1 // pred_region
      _
    $region17: #{classification_forward.1} parent=1 // pred_fallthru
      _
    // Predicated region
    $region18: #{classification_forward.1} parent=1 // pred_check
      _
    $region19: #{classification_forward.1} parent=1 // pred_check_branch
      %20 = sbr.rel (0) target = $region21
    $region20: #{classification_forward.1} parent=1 // pred_region
      _
    $region21: #{classification_forward.1} parent=1 // pred_fallthru
      _
    %v22 = vld [vmem:[%s0] sm:$0xff]
    %v23 = vpack.c.bf16 %v22, %v22
    %v24 = vld [vmem:[%s1] sm:$0xf]
    %v25 = vld [vmem:[%s1 + $0x4] sm:$0xf]
    %v26 = vld [vmem:[%s1 + $0x8] sm:$0xf]
    %v27 = vld [vmem:[%s1 + $0xc] sm:$0xf]
    %v28 = vld [vmem:[%s2] sm:$0x1]
    %v30 = vlaneseq
    %v31 = vshrl.u32 %v30, 7
    %v32 = vsub.s32 0, %v31
    %v33 = vrot.slane %v28, %v32
    %v39 = vunpack.c.l.b16 %v24
    %v40 = vunpack.c.l.b16 %v25
    %v41 = vunpack.c.l.b16 %v26
    %v42 = vunpack.c.l.b16 %v27
    %v43 = vpack.c.b16 %v40, %v39
    %v44 = vpack.c.b16 %v42, %v41
    %vm47 = vcmask 261120
    %v49 = vsel %vm47, %v23, 0
    %51 = vmatprep.subr.bf16.mxu0 0
    %52 = vmatpush1.bf16.msra.mxu0 %v43
    %53 = vmatprep.subr.bf16.mxu0 0
    %54 = vmatpush1.bf16.msra.mxu0 %v44
    %55 = vmatprep.subr.bf16.mxu0 0
    %56 = vmatpush1.bf16.msra.mxu0 0
    %57 = vmatprep.subr.bf16.mxu0 0
    %58 = vmatpush1.bf16.msra.mxu0 0
    %59 = vmatprep.subr.bf16.mxu0 0
    %60 = vmatpush1.bf16.msra.mxu0 0
    %61 = vmatprep.subr.bf16.mxu0 0
    %62 = vmatpush1.bf16.msra.mxu0 0
    %63 = vmatprep.subr.bf16.mxu0 0
    %64 = vmatpush1.bf16.msra.mxu0 0
    %65 = vmatprep.subr.bf16.mxu0 0
    %66 = vmatpush1.bf16.msra.mxu0 0
    %67 = vmatprep.subr.bf16.mxu0 0
    %68 = vmatpush1.bf16.msra.mxu0 0
    %69 = vmatprep.subr.bf16.mxu0 0
    %70 = vmatpush1.bf16.msra.mxu0 0
    %71 = vmatprep.subr.bf16.mxu0 0
    %72 = vmatpush1.bf16.msra.mxu0 0
    %73 = vmatprep.subr.bf16.mxu0 0
    %74 = vmatpush1.bf16.msra.mxu0 0
    %75 = vmatprep.subr.bf16.mxu0 0
    %76 = vmatpush1.bf16.msra.mxu0 0
    %77 = vmatprep.subr.bf16.mxu0 0
    %78 = vmatpush1.bf16.msra.mxu0 0
    %79 = vmatprep.subr.bf16.mxu0 0
    %80 = vmatpush1.bf16.msra.mxu0 0
    %81 = vmatprep.subr.bf16.mxu0 0
    %82 = vmatpush1.bf16.msra.mxu0 0
    %83 = vmatprep.mubr.bf16.mxu0 0
    %84 = vmatmul.mubr.bf16.gmra.mrb[0].mxu0 %v49
    %v85 = vpop.f32.mrb[0].mxu0
    %v86 = vadd.f32 %v33, %v85
    %v87 = vpop.f32.mrb[0].mxu0
    %v88 = vpop.f32.mrb[0].mxu0
    %v89 = vpop.f32.mrb[0].mxu0
    %90 = vdwg.mxu0
    %v91 = vmax.f32 %v86, 0.0
    %v92 = vpack.c.bf16 %v91, %v91
    %v93 = vld [vmem:[%s3] sm:$0xf]
    %v94 = vld [vmem:[%s3 + $0x4] sm:$0xf]
    %v95 = vld [vmem:[%s3 + $0x8] sm:$0xf]
    %v96 = vld [vmem:[%s3 + $0xc] sm:$0xf]
    %v97 = vld [vmem:[%s3 + $0x10] sm:$0xf]
    %v98 = vld [vmem:[%s3 + $0x14] sm:$0xf]
    %v99 = vld [vmem:[%s3 + $0x18] sm:$0xf]
    %v100 = vld [vmem:[%s3 + $0x1c] sm:$0xf]
    %v101 = vld [vmem:[%s3 + $0x20] sm:$0xf]
    %v102 = vld [vmem:[%s3 + $0x24] sm:$0xf]
    %v103 = vld [vmem:[%s3 + $0x28] sm:$0xf]
    %v104 = vld [vmem:[%s3 + $0x2c] sm:$0xf]
    %v105 = vld [vmem:[%s3 + $0x30] sm:$0xf]
    %v106 = vld [vmem:[%s3 + $0x34] sm:$0xf]
    %v107 = vld [vmem:[%s3 + $0x38] sm:$0xf]
    %v108 = vld [vmem:[%s3 + $0x3c] sm:$0xf]
    %v109 = vld [vmem:[%s4] sm:$0x1]
    %v111 = vlaneseq
    %v112 = vshrl.u32 %v111, 7
    %v113 = vsub.s32 0, %v112
    %v114 = vrot.slane %v109, %v113
    %v132 = vunpack.c.l.b16 %v93
    %v133 = vunpack.c.l.b16 %v94
    %v134 = vunpack.c.l.b16 %v95
    %v135 = vunpack.c.l.b16 %v96
    %v136 = vunpack.c.l.b16 %v97
    %v137 = vunpack.c.l.b16 %v98
    %v138 = vunpack.c.l.b16 %v99
    %v139 = vunpack.c.l.b16 %v100
    %v140 = vunpack.c.l.b16 %v101
    %v141 = vunpack.c.l.b16 %v102
    %v142 = vunpack.c.l.b16 %v103
    %v143 = vunpack.c.l.b16 %v104
    %v144 = vunpack.c.l.b16 %v105
    %v145 = vunpack.c.l.b16 %v106
    %v146 = vunpack.c.l.b16 %v107
    %v147 = vunpack.c.l.b16 %v108
    %v148 = vpack.c.b16 %v133, %v132
    %v149 = vpack.c.b16 %v135, %v134
    %v150 = vpack.c.b16 %v137, %v136
    %v151 = vpack.c.b16 %v139, %v138
    %v152 = vpack.c.b16 %v141, %v140
    %v153 = vpack.c.b16 %v143, %v142
    %v154 = vpack.c.b16 %v145, %v144
    %v155 = vpack.c.b16 %v147, %v146
    %164 = vmatprep.subr.bf16.mxu0 0
    %165 = vmatpush1.bf16.msra.mxu0 %v148
    %166 = vmatprep.subr.bf16.mxu0 0
    %167 = vmatpush1.bf16.msra.mxu0 %v149
    %168 = vmatprep.subr.bf16.mxu0 0
    %169 = vmatpush1.bf16.msra.mxu0 %v150
    %170 = vmatprep.subr.bf16.mxu0 0
    %171 = vmatpush1.bf16.msra.mxu0 %v151
    %172 = vmatprep.subr.bf16.mxu0 0
    %173 = vmatpush1.bf16.msra.mxu0 %v152
    %174 = vmatprep.subr.bf16.mxu0 0
    %175 = vmatpush1.bf16.msra.mxu0 %v153
    %176 = vmatprep.subr.bf16.mxu0 0
    %177 = vmatpush1.bf16.msra.mxu0 %v154
    %178 = vmatprep.subr.bf16.mxu0 0
    %179 = vmatpush1.bf16.msra.mxu0 %v155
    %180 = vmatprep.subr.bf16.mxu0 0
    %181 = vmatpush1.bf16.msra.mxu0 0
    %182 = vmatprep.subr.bf16.mxu0 0
    %183 = vmatpush1.bf16.msra.mxu0 0
    %184 = vmatprep.subr.bf16.mxu0 0
    %185 = vmatpush1.bf16.msra.mxu0 0
    %186 = vmatprep.subr.bf16.mxu0 0
    %187 = vmatpush1.bf16.msra.mxu0 0
    %188 = vmatprep.subr.bf16.mxu0 0
    %189 = vmatpush1.bf16.msra.mxu0 0
    %190 = vmatprep.subr.bf16.mxu0 0
    %191 = vmatpush1.bf16.msra.mxu0 0
    %192 = vmatprep.subr.bf16.mxu0 0
    %193 = vmatpush1.bf16.msra.mxu0 0
    %194 = vmatprep.subr.bf16.mxu0 0
    %195 = vmatpush1.bf16.msra.mxu0 0
    %196 = vmatprep.mubr.bf16.mxu0 0
    %197 = vmatmul.mubr.bf16.gmra.mrb[0].mxu0 %v92
    %v198 = vpop.f32.mrb[0].mxu0
    %v199 = vadd.f32 %v114, %v198
    %v200 = vpop.f32.mrb[0].mxu0
    %v201 = vpop.f32.mrb[0].mxu0
    %v202 = vpop.f32.mrb[0].mxu0
    %203 = vdwg.mxu0
    %vm204 = vcmask 64512
    %205 = vst.msk [vmem:[#allocation2] sm:$0xff] %vm204, %v199
    // Predicated region
    $region22: #{classification_forward.1} parent=1 // pred_check
      _
    $region23: #{classification_forward.1} parent=1 // pred_check_branch
      %207 = sbr.rel (0) target = $region25
    $region24: #{classification_forward.1} parent=1 // pred_region
      %s209 = ssub.s32 128, 128
      %210 = vsyncadd [#allocation3], %s209
      %s212 = sshll.u32 [#allocation2], 4
      %s213 = int_to_ptr.vmem [resolvable:$true] %s212
      %215 = dma.vmem_to_hbm [thread:$0]  %s213, 128, %s5, [#allocation3]
    $region25: #{classification_forward.1} parent=1 // pred_fallthru
      _
    // Predicated region
    $region26: #{classification_forward.1} parent=1 // pred_check
      _
    $region27: #{classification_forward.1} parent=1 // pred_check_branch
      %217 = sbr.rel (0) target = $region29
    $region28: #{classification_forward.1} parent=1 // pred_region
      %218 = dma.done [#allocation3], 128
    $region29: #{classification_forward.1} parent=1 // pred_fallthru
      _
    %219 = vsyncpa [#allocation3], 1

</llo_original>
